<compile_context>
chip_gen: v5e
topology: v5e:2x2
jax: 0.10.0
libtpu: 0.0.40
codegen_flags: <defaults>
</compile_context>

<pallas_src>
import math
from functools import partial

import jax
import jax.numpy as jnp
from jax.experimental import pallas as pl
from jax.experimental.pallas import tpu as pltpu


def _round_up(x, m):
    return ((x + m - 1) // m) * m


def obs_encoder_kernel(x_ref, w0_ref, b0_ref, w1_ref, b1_ref, w2_ref, b2_ref,
                       out_ref):
    """Feature-major MLP forward on one batch tile.

    x_ref  : (obs_dim, TB)   features on sublanes, batch on lanes
    wN_ref : (out_f, in_f)   PyTorch nn.Linear weight layout (compute dtype)
    bN_ref : (out_f, 1)      f32, broadcast along the lane (batch) axis
    out_ref: (out_dim, TB)   f32, lane-dense even when out_dim == 1
    """
    cdt = x_ref.dtype  # MXU input dtype (bf16 by default, f32 optional)

    h = jnp.dot(w0_ref[...], x_ref[...], preferred_element_type=jnp.float32)
    # cast-then-relu: exact for max(x, 0); packed VALU passes in the bf16 path
    h = jnp.maximum((h + b0_ref[...]).astype(cdt), 0)

    h = jnp.dot(w1_ref[...], h, preferred_element_type=jnp.float32)
    h = jnp.maximum((h + b1_ref[...]).astype(cdt), 0)

    y = jnp.dot(w2_ref[...], h, preferred_element_type=jnp.float32) + b2_ref[...]
    out_ref[...] = y.astype(out_ref.dtype)  # identity output layer


def prepare_params(params, compute_dtype=jnp.bfloat16):
    """One-time param prep: weights in the MXU input dtype, biases kept f32."""
    return [(w.astype(compute_dtype), b.astype(jnp.float32)) for (w, b) in params]


@partial(jax.jit, static_argnames=("block_b",))
def obs_encoder_forward(obs, params, block_b=32768):
    """Forward pass matching ObsEncoder.forward (squeeze(-1) when out_dim==1)."""
    B, obs_dim = obs.shape
    (w0, b0), (w1, b1), (w2, b2) = params
    h0, h1 = w0.shape[0], w1.shape[0]
    out_dim = w2.shape[0]
    cdt = w0.dtype  # compute dtype comes from the prepared weights

    # Cast before the transpose (halves the transpose bytes in the bf16 path);
    # under jit this fuses into a single layout pass feeding the kernel.
    obs_t = obs.astype(cdt).T  # (obs_dim, B)

    # Batch tile selection:
    #  - small batches: one full-extent tile (fixed cost dominates anyway)
    #  - otherwise: big 128-lane-aligned tiles (default cap 32768) with at
    #    least 2 grid steps so v7x's two TensorCores both get work.
    small_cutoff = min(1024, block_b)
    if B <= small_cutoff:
        tb = B
    else:
        tb_cap = max(128, _round_up(block_b, 128))
        tb = min(tb_cap, _round_up(pl.cdiv(B, 2), 128))
    grid = (pl.cdiv(B, tb),)  # ragged final block handled by Pallas (no jnp.pad)

    def _rep(arr):  # replicated weights / biases: constant block index
        return pl.BlockSpec(arr.shape, lambda i: (0, 0))

    flops = 2 * B * (obs_dim * h0 + h0 * h1 + h1 * out_dim)
    bytes_accessed = int(
        obs.size * cdt.itemsize
        + sum(int(a.size) * a.dtype.itemsize for a in (w0, b0, w1, b1, w2, b2))
        + B * out_dim * 4)
    cost = pl.CostEstimate(flops=flops, transcendentals=0,
                           bytes_accessed=bytes_accessed)

    out_t = pl.pallas_call(
        obs_encoder_kernel,
        out_shape=jax.ShapeDtypeStruct((out_dim, B), jnp.float32),
        grid=grid,
        in_specs=[
            pl.BlockSpec((obs_dim, tb), lambda i: (0, i)),  # obs tile (pipelined)
            _rep(w0), _rep(b0),
            _rep(w1), _rep(b1),
            _rep(w2), _rep(b2),
        ],
        out_specs=pl.BlockSpec((out_dim, tb), lambda i: (0, i)),
        compiler_params=pltpu.CompilerParams(
            dimension_semantics=("parallel",),     # shard batch steps across TCs
            vmem_limit_bytes=48 * 1024 * 1024,     # safe on v7x's 64 MiB VMEM
        ),
        cost_estimate=cost,
    )(obs_t, w0, b0, w1, b1, w2, b2)

    if out_dim == 1:
        return out_t[0]   # .squeeze(-1) semantics
    return out_t.T        # back to (B, out_dim)


def init_linear(key, fan_in, fan_out):
    """Deterministic kaiming_uniform-style init (PyTorch nn.Linear default)."""
    kw, kb = jax.random.split(key)
    bound = 1.0 / math.sqrt(fan_in)
    w = jax.random.uniform(kw, (fan_out, fan_in), jnp.float32, -bound, bound)
    b = jax.random.uniform(kb, (fan_out, 1), jnp.float32, -bound, bound)
    return w, b


def make_params(key, dims):
    keys = jax.random.split(key, len(dims) - 1)
    return [init_linear(k, dims[i], dims[i + 1]) for i, k in enumerate(keys)]


def reference_forward(obs, params, out_dim):
    (w0, b0), (w1, b1), (w2, b2) = params
    h = jnp.maximum(obs @ w0.T + b0[:, 0], 0.0)
    h = jnp.maximum(h @ w1.T + b1[:, 0], 0.0)
    y = h @ w2.T + b2[:, 0]
    return y[:, 0] if out_dim == 1 else y


if __name__ == "__main__":
    # Shapes consistent with the module: obs_space Box(shape=(16,)),
    # act_space Box(shape=(4,)) (unused in forward), hidden_sizes=[32, 32].
    obs_dim = 16
    hidden_sizes = [32, 32]

    key = jax.random.PRNGKey(0)
    k_obs_small, k_obs_big, k_p1, k_p3 = jax.random.split(key, 4)

    params1 = make_params(k_p1, [obs_dim, *hidden_sizes, 1])
    params1_f32 = prepare_params(params1, jnp.float32)
    params1_bf16 = prepare_params(params1, jnp.bfloat16)   # default / recommended

    obs_small = jax.random.normal(k_obs_small, (8, obs_dim), jnp.float32)
    obs_big = jax.random.normal(k_obs_big, (600, obs_dim), jnp.float32)

    # --- case 1: module-default shapes, f32 path (tight check) ---------------
    out1 = jax.block_until_ready(obs_encoder_forward(obs_small, params1_f32))
    ref1 = reference_forward(obs_small, params1, 1)
    assert out1.shape == (8,), out1.shape
    assert jnp.allclose(out1, ref1, atol=1e-4, rtol=1e-4)

    # --- case 2: bf16 default path, tiny batch (out_dim==1 squeeze) ----------
    out2 = jax.block_until_ready(obs_encoder_forward(obs_small, params1_bf16))
    assert out2.shape == (8,), out2.shape
    assert jnp.allclose(out2, ref1, atol=5e-2, rtol=5e-2)

    # --- case 3: ragged multi-tile grid (block_b=256 -> 3 grid steps), f32 ---
    out3 = jax.block_until_ready(
        obs_encoder_forward(obs_big, params1_f32, block_b=256))
    ref3 = reference_forward(obs_big, params1, 1)
    assert out3.shape == (600,), out3.shape
    assert jnp.allclose(out3, ref3, atol=1e-4, rtol=1e-4)

    # --- case 4: bf16 default path, larger batch, default (large) tile -------
    out4 = jax.block_until_ready(obs_encoder_forward(obs_big, params1_bf16))
    assert out4.shape == (600,), out4.shape
    assert jnp.allclose(out4, ref3, atol=5e-2, rtol=5e-2)

    # --- case 5: out_dim > 1 (no squeeze), f32 --------------------------------
    params3 = make_params(k_p3, [obs_dim, *hidden_sizes, 3])
    params3_f32 = prepare_params(params3, jnp.float32)
    out5 = jax.block_until_ready(obs_encoder_forward(obs_small, params3_f32))
    ref5 = reference_forward(obs_small, params3, 3)
    assert out5.shape == (8, 3), out5.shape
    assert jnp.allclose(out5, ref5, atol=1e-4, rtol=1e-4)

    print("KERNEL_OK")
</pallas_src>

<mosaic_0001>
module attributes {stable_mosaic.version = 11 : i64} {
  func.func @obs_encoder_kernel(%arg0: i32, %arg1: memref<16x8xf32, #tpu.memory_space<vmem>>, %arg2: memref<32x16xf32, #tpu.memory_space<vmem>>, %arg3: memref<32x1xf32, #tpu.memory_space<vmem>>, %arg4: memref<32x32xf32, #tpu.memory_space<vmem>>, %arg5: memref<32x1xf32, #tpu.memory_space<vmem>>, %arg6: memref<1x32xf32, #tpu.memory_space<vmem>>, %arg7: memref<1x1xf32, #tpu.memory_space<vmem>>, %arg8: memref<1x8xf32, #tpu.memory_space<vmem>>) attributes {dimension_semantics = [#tpu.dimension_semantics<parallel>], iteration_bounds = array<i64: 1>, scalar_prefetch = 0 : i64, scratch_operands = 0 : i64, tpu.core_type = #tpu.core_type<tc>, window_params = [{transform_indices = @transform_0, window_bounds = array<i64: 16, 8>}, {pipeline_mode = #tpu.pipeline_mode<synchronous>, transform_indices = @transform_1, window_bounds = array<i64: 32, 16>}, {pipeline_mode = #tpu.pipeline_mode<synchronous>, transform_indices = @transform_2, window_bounds = array<i64: 32, 1>}, {pipeline_mode = #tpu.pipeline_mode<synchronous>, transform_indices = @transform_3, window_bounds = array<i64: 32, 32>}, {pipeline_mode = #tpu.pipeline_mode<synchronous>, transform_indices = @transform_4, window_bounds = array<i64: 32, 1>}, {pipeline_mode = #tpu.pipeline_mode<synchronous>, transform_indices = @transform_5, window_bounds = array<i64: 1, 32>}, {pipeline_mode = #tpu.pipeline_mode<synchronous>, transform_indices = @transform_6, window_bounds = array<i64: 1, 1>}, {transform_indices = @transform_7, window_bounds = array<i64: 1, 8>}]} {
    %c0 = arith.constant 0 : index
    %c0_0 = arith.constant 0 : index
    %0 = vector.load %arg2[%c0, %c0_0] : memref<32x16xf32, #tpu.memory_space<vmem>>, vector<32x16xf32>
    %c0_1 = arith.constant 0 : index
    %c0_2 = arith.constant 0 : index
    %1 = vector.load %arg1[%c0_1, %c0_2] : memref<16x8xf32, #tpu.memory_space<vmem>>, vector<16x8xf32>
    %cst = arith.constant dense<0.000000e+00> : vector<32x8xf32>
    %2 = tpu.matmul %0, %1, %cst {dimension_numbers = #tpu.dot_dimension_numbers<[1], [0], [0], [1], [0, 0, 1, 1], [], []>} : vector<32x16xf32>, vector<16x8xf32>, vector<32x8xf32> -> vector<32x8xf32>
    %c0_3 = arith.constant 0 : index
    %c0_4 = arith.constant 0 : index
    %3 = vector.load %arg3[%c0_3, %c0_4] : memref<32x1xf32, #tpu.memory_space<vmem>>, vector<32x1xf32>
    %4 = vector.broadcast %3 : vector<32x1xf32> to vector<32x8xf32>
    %5 = arith.addf %2, %4 : vector<32x8xf32>
    %cst_5 = arith.constant 0.000000e+00 : f32
    %6 = vector.broadcast %cst_5 : f32 to vector<32x8xf32>
    %7 = arith.maximumf %5, %6 : vector<32x8xf32>
    %c0_6 = arith.constant 0 : index
    %c0_7 = arith.constant 0 : index
    %8 = vector.load %arg4[%c0_6, %c0_7] : memref<32x32xf32, #tpu.memory_space<vmem>>, vector<32x32xf32>
    %cst_8 = arith.constant dense<0.000000e+00> : vector<32x8xf32>
    %9 = tpu.matmul %8, %7, %cst_8 {dimension_numbers = #tpu.dot_dimension_numbers<[1], [0], [0], [1], [0, 0, 1, 1], [], []>} : vector<32x32xf32>, vector<32x8xf32>, vector<32x8xf32> -> vector<32x8xf32>
    %c0_9 = arith.constant 0 : index
    %c0_10 = arith.constant 0 : index
    %10 = vector.load %arg5[%c0_9, %c0_10] : memref<32x1xf32, #tpu.memory_space<vmem>>, vector<32x1xf32>
    %11 = vector.broadcast %10 : vector<32x1xf32> to vector<32x8xf32>
    %12 = arith.addf %9, %11 : vector<32x8xf32>
    %cst_11 = arith.constant 0.000000e+00 : f32
    %13 = vector.broadcast %cst_11 : f32 to vector<32x8xf32>
    %14 = arith.maximumf %12, %13 : vector<32x8xf32>
    %c0_12 = arith.constant 0 : index
    %c0_13 = arith.constant 0 : index
    %15 = vector.load %arg6[%c0_12, %c0_13] : memref<1x32xf32, #tpu.memory_space<vmem>>, vector<1x32xf32>
    %cst_14 = arith.constant dense<0.000000e+00> : vector<1x8xf32>
    %16 = tpu.matmul %15, %14, %cst_14 {dimension_numbers = #tpu.dot_dimension_numbers<[1], [0], [0], [1], [0, 0, 1, 1], [], []>} : vector<1x32xf32>, vector<32x8xf32>, vector<1x8xf32> -> vector<1x8xf32>
    %c0_15 = arith.constant 0 : index
    %c0_16 = arith.constant 0 : index
    %17 = vector.load %arg7[%c0_15, %c0_16] : memref<1x1xf32, #tpu.memory_space<vmem>>, vector<1x1xf32>
    %18 = vector.broadcast %17 : vector<1x1xf32> to vector<1x8xf32>
    %19 = arith.addf %16, %18 : vector<1x8xf32>
    %c0_17 = arith.constant 0 : index
    %c0_18 = arith.constant 0 : index
    %20 = vector.load %arg8[%c0_17, %c0_18] : memref<1x8xf32, #tpu.memory_space<vmem>>, vector<1x8xf32>
    tpu.vector_store %arg8[%c0_17, %c0_18], %19 {strides = array<i32>} : memref<1x8xf32, #tpu.memory_space<vmem>>, vector<1x8xf32>,
    return
  }
  func.func @transform_0(%arg0: i32) -> (i32, i32) {
    %c0_i32 = arith.constant 0 : i32
    %c0_i32_0 = arith.constant 0 : i32
    return %c0_i32, %arg0 : i32, i32
  }
  func.func @transform_1(%arg0: i32) -> (i32, i32) {
    %c0_i32 = arith.constant 0 : i32
    %c0_i32_0 = arith.constant 0 : i32
    %c0_i32_1 = arith.constant 0 : i32
    return %c0_i32, %c0_i32_0 : i32, i32
  }
  func.func @transform_2(%arg0: i32) -> (i32, i32) {
    %c0_i32 = arith.constant 0 : i32
    %c0_i32_0 = arith.constant 0 : i32
    %c0_i32_1 = arith.constant 0 : i32
    return %c0_i32, %c0_i32_0 : i32, i32
  }
  func.func @transform_3(%arg0: i32) -> (i32, i32) {
    %c0_i32 = arith.constant 0 : i32
    %c0_i32_0 = arith.constant 0 : i32
    %c0_i32_1 = arith.constant 0 : i32
    return %c0_i32, %c0_i32_0 : i32, i32
  }
  func.func @transform_4(%arg0: i32) -> (i32, i32) {
    %c0_i32 = arith.constant 0 : i32
    %c0_i32_0 = arith.constant 0 : i32
    %c0_i32_1 = arith.constant 0 : i32
    return %c0_i32, %c0_i32_0 : i32, i32
  }
  func.func @transform_5(%arg0: i32) -> (i32, i32) {
    %c0_i32 = arith.constant 0 : i32
    %c0_i32_0 = arith.constant 0 : i32
    %c0_i32_1 = arith.constant 0 : i32
    return %c0_i32, %c0_i32_0 : i32, i32
  }
  func.func @transform_6(%arg0: i32) -> (i32, i32) {
    %c0_i32 = arith.constant 0 : i32
    %c0_i32_0 = arith.constant 0 : i32
    %c0_i32_1 = arith.constant 0 : i32
    return %c0_i32, %c0_i32_0 : i32, i32
  }
  func.func @transform_7(%arg0: i32) -> (i32, i32) {
    %c0_i32 = arith.constant 0 : i32
    %c0_i32_0 = arith.constant 0 : i32
    return %c0_i32, %arg0 : i32, i32
  }
}

</mosaic_0001>

<llo_original>
// kernel: obs_encoder_forward.1
$region0: #{obs_encoder_forward.1}
  #allocation0 [shape = 'u32[]', space=smem, size = 0x4, offset = 0x4, fixed_abs, tag = 'smem constant byte address 0x4 - core index']
  #allocation1 [shape = 'u32[72,128]{1,0:T(1,128)}', space=vmem, size = 0x9000, scoped, tag = 'internal scratch']
  #allocation2 [shape = 'f32[1,1]{1,0:T(1,128)S(1)}', space=vmem, size = 0x200, scoped, tag = 'scoped memory for obs_encoder_forward.1']
  %s0 = inlined_call_operand.vmem [shape: f32[16,8], index: 0, kind: input, shape index: {}]
  %s1 = inlined_call_operand.vmem [shape: f32[32,16], index: 1, kind: input, shape index: {}]
  %s2 = inlined_call_operand.vmem [shape: f32[32,1], index: 2, kind: input, shape index: {}]
  %s3 = inlined_call_operand.vmem [shape: f32[32,32], index: 3, kind: input, shape index: {}]
  %s4 = inlined_call_operand.vmem [shape: f32[32,1], index: 4, kind: input, shape index: {}]
  %s5 = inlined_call_operand.vmem [shape: f32[1,32], index: 5, kind: input, shape index: {}]
  %s6 = inlined_call_operand.<no memory space> [shape: f32[1,1], index: 6, kind: input, shape index: {}]
  %s7 = inlined_call_operand.hbm [shape: f32[1,8], index: 7, kind: output, shape index: {}]
  %s8 = sld [smem:[#allocation0]]
  $region38: #{obs_encoder_forward.1} parent=0
    _
  %s10 = ssub.s32 1, %s8
  %s11 = scalar_select 0, %s10, %s8
  %v12 = vstv %s6
  %13 = vst [vmem:[#allocation2] sm:$0x1] %v12
  $region1: #{obs_encoder_forward.1} parent=0
    #allocation3 [shape = 'u8[512]{0}', space=vmem, size = 0x400, scoped, tag = 'output window, operand 0, single buffered']
    #allocation4 [shape = 's32[1]{0}', space=sflag, size = 0x4, scoped, tag = 'scoped memory for obs_encoder_forward.1']
    %14 = vsyncpa [#allocation4], 0
    // Predicated region
    $region2: #{obs_encoder_forward.1} parent=1 // pred_check
      _
    $region3: #{obs_encoder_forward.1} parent=1 // pred_check_branch
      %16 = sbr.rel (0) target = $region5
    $region4: #{obs_encoder_forward.1} parent=1 // pred_region
      _
    $region5: #{obs_encoder_forward.1} parent=1 // pred_fallthru
      _
    // Predicated region
    $region6: #{obs_encoder_forward.1} parent=1 // pred_check
      _
    $region7: #{obs_encoder_forward.1} parent=1 // pred_check_branch
      %18 = sbr.rel (0) target = $region9
    $region8: #{obs_encoder_forward.1} parent=1 // pred_region
      _
    $region9: #{obs_encoder_forward.1} parent=1 // pred_fallthru
      _
    // Predicated region
    $region10: #{obs_encoder_forward.1} parent=1 // pred_check
      _
    $region11: #{obs_encoder_forward.1} parent=1 // pred_check_branch
      %20 = sbr.rel (0) target = $region13
    $region12: #{obs_encoder_forward.1} parent=1 // pred_region
      _
    $region13: #{obs_encoder_forward.1} parent=1 // pred_fallthru
      _
    // Predicated region
    $region14: #{obs_encoder_forward.1} parent=1 // pred_check
      _
    $region15: #{obs_encoder_forward.1} parent=1 // pred_check_branch
      %22 = sbr.rel (0) target = $region17
    $region16: #{obs_encoder_forward.1} parent=1 // pred_region
      _
    $region17: #{obs_encoder_forward.1} parent=1 // pred_fallthru
      _
    // Predicated region
    $region18: #{obs_encoder_forward.1} parent=1 // pred_check
      _
    $region19: #{obs_encoder_forward.1} parent=1 // pred_check_branch
      %24 = sbr.rel (0) target = $region21
    $region20: #{obs_encoder_forward.1} parent=1 // pred_region
      _
    $region21: #{obs_encoder_forward.1} parent=1 // pred_fallthru
      _
    // Predicated region
    $region22: #{obs_encoder_forward.1} parent=1 // pred_check
      _
    $region23: #{obs_encoder_forward.1} parent=1 // pred_check_branch
      %26 = sbr.rel (0) target = $region25
    $region24: #{obs_encoder_forward.1} parent=1 // pred_region
      _
    $region25: #{obs_encoder_forward.1} parent=1 // pred_fallthru
      _
    // Predicated region
    $region26: #{obs_encoder_forward.1} parent=1 // pred_check
      _
    $region27: #{obs_encoder_forward.1} parent=1 // pred_check_branch
      %28 = sbr.rel (0) target = $region29
    $region28: #{obs_encoder_forward.1} parent=1 // pred_region
      _
    $region29: #{obs_encoder_forward.1} parent=1 // pred_fallthru
      _
    %v29 = vld [vmem:[%s1] sm:$0xff]
    %v30 = vld [vmem:[%s1 + $0x8] sm:$0xff]
    %v31 = vld [vmem:[%s1 + $0x10] sm:$0xff]
    %v32 = vld [vmem:[%s1 + $0x18] sm:$0xff]
    %v33 = vld [vmem:[%s0] sm:$0xff]
    %v34 = vld [vmem:[%s0 + $0x8] sm:$0xff]
    %v35 = vld [vmem:[%s2] sm:$0xff]
    %v36 = vld [vmem:[%s2 + $0x8] sm:$0xff]
    %v37 = vld [vmem:[%s2 + $0x10] sm:$0xff]
    %v38 = vld [vmem:[%s2 + $0x18] sm:$0xff]
    %40 = vset.pattern.permute.xlu0 0
    %41 = vperm.xlu0 %40, %v35
    %v42 = vpop.permute.xlu0 %41
    %45 = vset.pattern.permute.xlu0 0
    %46 = vperm.xlu0 %45, %v36
    %v47 = vpop.permute.xlu0 %46
    %50 = vset.pattern.permute.xlu0 0
    %51 = vperm.xlu0 %50, %v37
    %v52 = vpop.permute.xlu0 %51
    %55 = vset.pattern.permute.xlu0 0
    %56 = vperm.xlu0 %55, %v38
    %v57 = vpop.permute.xlu0 %56
    %vm59 = vcmask 130048
    %v61 = vsel %vm59, %v29, 0
    %v64 = vsel %vm59, %v30, 0
    %v67 = vsel %vm59, %v31, 0
    %v70 = vsel %vm59, %v32, 0
    %72 = vmatpush.msra.mxu0 0.0
    %73 = vmatpush.msra.mxu0 0.0
    %74 = vmatpush.msra.mxu0 0.0
    %75 = vmatpush.msra.mxu0 0.0
    %76 = vmatpush.msra.mxu0 0.0
    %77 = vmatpush.msra.mxu0 0.0
    %78 = vmatpush.msra.mxu0 0.0
    %79 = vmatpush.msra.mxu0 0.0
    %80 = vmatpush.msra.mxu0 0.0
    %81 = vmatpush.msra.mxu0 0.0
    %82 = vmatpush.msra.mxu0 0.0
    %83 = vmatpush.msra.mxu0 0.0
    %84 = vmatpush.msra.mxu0 0.0
    %85 = vmatpush.msra.mxu0 0.0
    %86 = vmatpush.msra.mxu0 %v34
    %87 = vmatpush.msra.mxu0 %v33
    %88 = vmatmul.f32.gmra.mxu0 %v61
    %v89 = vpop.f32.mrf.mxu0
    %v90 = vadd.f32 %v42, %v89
    %91 = vmatmul.f32.gmra.mxu0 %v64
    %v92 = vpop.f32.mrf.mxu0
    %v93 = vadd.f32 %v47, %v92
    %94 = vmatmul.f32.gmra.mxu0 %v67
    %v95 = vpop.f32.mrf.mxu0
    %v96 = vadd.f32 %v52, %v95
    %97 = vmatmul.f32.gmra.mxu0 %v70
    %v98 = vpop.f32.mrf.mxu0
    %v99 = vadd.f32 %v57, %v98
    %100 = vdwg.mxu0
    %v101 = vmax.f32 %v90, 0.0
    %v102 = vmax.f32 %v93, 0.0
    %v103 = vmax.f32 %v96, 0.0
    %v104 = vmax.f32 %v99, 0.0
    %v105 = vld [vmem:[%s3] sm:$0xff]
    %v106 = vld [vmem:[%s3 + $0x8] sm:$0xff]
    %v107 = vld [vmem:[%s3 + $0x10] sm:$0xff]
    %v108 = vld [vmem:[%s3 + $0x18] sm:$0xff]
    %v109 = vld [vmem:[%s4] sm:$0xff]
    %v110 = vld [vmem:[%s4 + $0x8] sm:$0xff]
    %v111 = vld [vmem:[%s4 + $0x10] sm:$0xff]
    %v112 = vld [vmem:[%s4 + $0x18] sm:$0xff]
    %114 = vset.pattern.permute.xlu0 0
    %115 = vperm.xlu0 %114, %v109
    %v116 = vpop.permute.xlu0 %115
    %119 = vset.pattern.permute.xlu0 0
    %120 = vperm.xlu0 %119, %v110
    %v121 = vpop.permute.xlu0 %120
    %124 = vset.pattern.permute.xlu0 0
    %125 = vperm.xlu0 %124, %v111
    %v126 = vpop.permute.xlu0 %125
    %129 = vset.pattern.permute.xlu0 0
    %130 = vperm.xlu0 %129, %v112
    %v131 = vpop.permute.xlu0 %130
    %vm133 = vcmask 261120
    %v135 = vsel %vm133, %v105, 0
    %v138 = vsel %vm133, %v106, 0
    %v141 = vsel %vm133, %v107, 0
    %v144 = vsel %vm133, %v108, 0
    %146 = vmatpush.msra.mxu0 0.0
    %147 = vmatpush.msra.mxu0 0.0
    %148 = vmatpush.msra.mxu0 0.0
    %149 = vmatpush.msra.mxu0 0.0
    %150 = vmatpush.msra.mxu0 0.0
    %151 = vmatpush.msra.mxu0 0.0
    %152 = vmatpush.msra.mxu0 0.0
    %153 = vmatpush.msra.mxu0 0.0
    %154 = vmatpush.msra.mxu0 0.0
    %155 = vmatpush.msra.mxu0 0.0
    %156 = vmatpush.msra.mxu0 0.0
    %157 = vmatpush.msra.mxu0 0.0
    %158 = vmatpush.msra.mxu0 %v104
    %159 = vmatpush.msra.mxu0 %v103
    %160 = vmatpush.msra.mxu0 %v102
    %161 = vmatpush.msra.mxu0 %v101
    %162 = vmatmul.f32.gmra.mxu0 %v135
    %v163 = vpop.f32.mrf.mxu0
    %v164 = vadd.f32 %v116, %v163
    %165 = vmatmul.f32.gmra.mxu0 %v138
    %v166 = vpop.f32.mrf.mxu0
    %v167 = vadd.f32 %v121, %v166
    %168 = vmatmul.f32.gmra.mxu0 %v141
    %v169 = vpop.f32.mrf.mxu0
    %v170 = vadd.f32 %v126, %v169
    %171 = vmatmul.f32.gmra.mxu0 %v144
    %v172 = vpop.f32.mrf.mxu0
    %v173 = vadd.f32 %v131, %v172
    %174 = vdwg.mxu0
    %v175 = vmax.f32 %v164, 0.0
    %v176 = vmax.f32 %v167, 0.0
    %v177 = vmax.f32 %v170, 0.0
    %v178 = vmax.f32 %v173, 0.0
    %v179 = vld [vmem:[%s5] sm:$0x1]
    %v180 = vld [vmem:[#allocation2] sm:$0x1]
    %182 = vset.pattern.permute.xlu0 0
    %183 = vperm.xlu0 %182, %v180
    %v184 = vpop.permute.xlu0 %183
    %v186 = vperm.slane %v184, 0
    %v188 = vsel %vm133, %v179, 0
    %190 = vmatpush.msra.mxu0 0.0
    %191 = vmatpush.msra.mxu0 0.0
    %192 = vmatpush.msra.mxu0 0.0
    %193 = vmatpush.msra.mxu0 0.0
    %194 = vmatpush.msra.mxu0 0.0
    %195 = vmatpush.msra.mxu0 0.0
    %196 = vmatpush.msra.mxu0 0.0
    %197 = vmatpush.msra.mxu0 0.0
    %198 = vmatpush.msra.mxu0 0.0
    %199 = vmatpush.msra.mxu0 0.0
    %200 = vmatpush.msra.mxu0 0.0
    %201 = vmatpush.msra.mxu0 0.0
    %202 = vmatpush.msra.mxu0 %v178
    %203 = vmatpush.msra.mxu0 %v177
    %204 = vmatpush.msra.mxu0 %v176
    %205 = vmatpush.msra.mxu0 %v175
    %206 = vmatmul.f32.gmra.mxu0 %v188
    %v207 = vpop.f32.mrf.mxu0
    %v208 = vadd.f32 %v186, %v207
    %209 = vdwg.mxu0
    %vm210 = vcmask 57344
    %211 = vst.msk [vmem:[#allocation3] sm:$0x1] %vm210, %v208
    // Predicated region
    $region30: #{obs_encoder_forward.1} parent=1 // pred_check
      _
    $region31: #{obs_encoder_forward.1} parent=1 // pred_check_branch
      %213 = sbr.rel (0) target = $region33
    $region32: #{obs_encoder_forward.1} parent=1 // pred_region
      %215 = vsyncadd [#allocation4], 0
      %s217 = sshll.u32 [#allocation3], 4
      %s218 = int_to_ptr.vmem [resolvable:$true] %s217
      %s219 = sshll.u32 %s7, 4
      %s220 = int_to_ptr.hbm [resolvable:$true] %s219
      %222 = dma.vmem_to_hbm [thread:$0]  %s218, 16, %s220, [#allocation4]
    $region33: #{obs_encoder_forward.1} parent=1 // pred_fallthru
      _
    // Predicated region
    $region34: #{obs_encoder_forward.1} parent=1 // pred_check
      _
    $region35: #{obs_encoder_forward.1} parent=1 // pred_check_branch
      %224 = sbr.rel (0) target = $region37
    $region36: #{obs_encoder_forward.1} parent=1 // pred_region
      %226 = dma.done [#allocation4], 16
    $region37: #{obs_encoder_forward.1} parent=1 // pred_fallthru
      _
    %227 = vsyncpa [#allocation4], 1

</llo_original>
